<compile_context>
chip_gen: v5e
topology: v5e:2x2
jax: 0.10.0
libtpu: 0.0.40
codegen_flags: <defaults>
</compile_context>

<pallas_src>
import functools

import jax
import jax.numpy as jnp
from jax.experimental import pallas as pl
from jax.experimental.pallas import tpu as pltpu


def _leaky_relu(x, slope=0.01):
    return jnp.where(x > 0, x, slope * x)


def _causal_block_kernel(k, d, p, tl,
                         x_cur_ref, x_prev_ref,
                         w1_ref, b1_ref, w2_ref, b2_ref, wr_ref, br_ref,
                         out_ref):
    """One (batch, L-tile) block.

    x_cur_ref : (1, Cin, tl)      current L tile of the input
    x_prev_ref: (1, Cin, tl)      previous L tile (halo source; masked at li=0)
    w1_ref    : (Cout, k*Cin)     conv1 weight, taps flattened for im2col
    w2_ref    : (Cout, k*Cout)    conv2 weight, taps flattened for im2col
    wr_ref    : (Cout, Cin)       1x1 residual conv weight
    b*_ref    : (Cout, 1)         biases (f32)
    out_ref   : (1, Cout, tl)
    """
    li = pl.program_id(1)
    cin = x_cur_ref.shape[1]
    cdt = w1_ref.dtype                                     # compute dtype

    # Cast once; reused for the conv1 im2col and the 1x1 residual matmul.
    x_cur = x_cur_ref[0].astype(cdt)                       # (Cin, tl)

    # ---- causal left halo: last 2*p columns of the previous L tile ----
    if tl >= 2 * p:
        halo = x_prev_ref[0, :, tl - 2 * p:].astype(cdt)   # (Cin, 2p)
        halo = jnp.where(li > 0, halo, jnp.zeros_like(halo))
    else:
        # single-L-tile configuration: halo is entirely causal zero padding
        halo = jnp.zeros((cin, 2 * p), cdt)
    x_ext = jnp.concatenate([halo, x_cur], axis=-1)        # (Cin, tl + 2p)

    # ---- conv1: im2col over taps -> one MXU matmul (computed with +p halo) ----
    lh = tl + p
    xc1 = jnp.concatenate([x_ext[:, t * d: t * d + lh] for t in range(k)],
                          axis=0)                          # (k*Cin, tl + p)
    h = jnp.dot(w1_ref[...], xc1, preferred_element_type=jnp.float32)
    h = _leaky_relu(h + b1_ref[...])                       # (Cout, tl + p)
    # hidden values at global positions < 0 are the causal zero-padding of
    # conv2's input: zero only that pad region of the first tile.
    pos = jax.lax.broadcasted_iota(jnp.int32, (1, lh), 1)  # lane iota, broadcast
    h = jnp.where(jnp.logical_and(li == 0, pos < p), 0.0, h)

    # ---- conv2: im2col over taps -> one MXU matmul ----
    xc2 = jnp.concatenate([h[:, t * d: t * d + tl] for t in range(k)],
                          axis=0).astype(cdt)              # (k*Cout, tl)
    out_causal = jnp.dot(w2_ref[...], xc2, preferred_element_type=jnp.float32)
    out_causal = _leaky_relu(out_causal + b2_ref[...])     # (Cout, tl)

    # ---- residual 1x1 conv on the original (un-padded) input ----
    res = jnp.dot(wr_ref[...], x_cur,
                  preferred_element_type=jnp.float32) + br_ref[...]

    out_ref[0] = _leaky_relu(out_causal + res).astype(out_ref.dtype)


def _choose_l_tile(L, p, max_tl=512):
    """Pick the largest lane-dense L tile (multiple of 128, <= max_tl) that
    divides L and covers the 2*p halo; fall back to a single full-L tile."""
    best = None
    cand = 128
    while cand <= min(max_tl, L):
        if L % cand == 0 and cand >= 2 * p:
            best = cand
        cand += 128
    return best if best is not None else L


def causal_convolution_block(x, params, kernel_size, dilation,
                             tl=None, compute_dtype=None):
    """x: (B, Cin, L) PyTorch NCL layout.  Returns (B, Cout, L) (same layout,
    so stacked DTCR blocks never transpose)."""
    B, Cin, L = x.shape
    k, d = kernel_size, dilation
    p = (k - 1) * d                      # causal padding == chomp size
    w1, b1, w2, b2, wr, br = params
    Cout = w1.shape[0]

    if compute_dtype is not None:        # e.g. jnp.bfloat16 on v6e/v7x
        w1, w2, wr = (w.astype(compute_dtype) for w in (w1, w2, wr))

    if tl is None:
        tl = _choose_l_tile(L, p)
    assert L % tl == 0, (L, tl)
    n_lt = L // tl
    if n_lt > 1:
        assert tl >= 2 * p, "L tile must cover the 2*(k-1)*dilation halo"

    kern = functools.partial(_causal_block_kernel, k, d, p, tl)

    flops = 2 * B * L * (k * Cin * Cout + k * Cout * Cout + Cin * Cout)
    bytes_accessed = 4 * (2 * B * Cin * L + B * Cout * L
                          + k * Cout * (Cin + Cout) + Cin * Cout + 3 * Cout)

    # VMEM estimate (double-buffered blocks + in-kernel temporaries + weights).
    est = 4 * (2 * 2 * (2 * Cin + Cout) * tl
               + (k * Cin + 2 * k * Cout + 4 * Cout) * (tl + 2 * p)
               + k * Cout * (Cin + Cout) + Cin * Cout + 3 * Cout)
    vmem_limit = int(min(48 * 2**20, max(16 * 2**20, 4 * est)))

    out = pl.pallas_call(
        kern,
        out_shape=jax.ShapeDtypeStruct((B, Cout, L), x.dtype),
        grid=(B, n_lt),
        in_specs=[
            pl.BlockSpec((1, Cin, tl), lambda b, li: (b, 0, li)),
            pl.BlockSpec((1, Cin, tl),
                         lambda b, li: (b, 0, jnp.maximum(li - 1, 0))),
            pl.BlockSpec((Cout, k * Cin), lambda b, li: (0, 0)),
            pl.BlockSpec((Cout, 1), lambda b, li: (0, 0)),
            pl.BlockSpec((Cout, k * Cout), lambda b, li: (0, 0)),
            pl.BlockSpec((Cout, 1), lambda b, li: (0, 0)),
            pl.BlockSpec((Cout, Cin), lambda b, li: (0, 0)),
            pl.BlockSpec((Cout, 1), lambda b, li: (0, 0)),
        ],
        out_specs=pl.BlockSpec((1, Cout, tl), lambda b, li: (b, 0, li)),
        compiler_params=pltpu.CompilerParams(
            dimension_semantics=("parallel", "parallel"),
            vmem_limit_bytes=vmem_limit),
        cost_estimate=pl.CostEstimate(flops=flops, transcendentals=0,
                                      bytes_accessed=bytes_accessed),
    )(x, x, w1, b1, w2, b2, wr, br)
    return out


def _weight_norm(v, g):
    """PyTorch weight_norm (dim=0): w = g * v / ||v|| per output channel."""
    norm = jnp.sqrt(jnp.sum(v * v, axis=(1, 2), keepdims=True))
    return g[:, None, None] * v / norm


def init_params(key, in_channels, out_channels, kernel_size):
    ks = jax.random.split(key, 8)
    # conv1 (weight-normed): v (Cout, Cin, k), g (Cout,), bias (Cout,)
    v1 = jax.random.normal(ks[0], (out_channels, in_channels, kernel_size),
                           jnp.float32) * 0.3
    g1 = 1.0 + 0.1 * jax.random.normal(ks[1], (out_channels,), jnp.float32)
    b1 = 0.1 * jax.random.normal(ks[2], (out_channels,), jnp.float32)
    # conv2 (weight-normed): v (Cout, Cout, k)
    v2 = jax.random.normal(ks[3], (out_channels, out_channels, kernel_size),
                           jnp.float32) * 0.3
    g2 = 1.0 + 0.1 * jax.random.normal(ks[4], (out_channels,), jnp.float32)
    b2 = 0.1 * jax.random.normal(ks[5], (out_channels,), jnp.float32)
    # up/down-sample 1x1 conv: (Cout, Cin)
    wr = jax.random.normal(ks[6], (out_channels, in_channels), jnp.float32) * 0.3
    br = 0.1 * jax.random.normal(ks[7], (out_channels,), jnp.float32)

    w1_oik = _weight_norm(v1, g1)                    # (Cout, Cin, k)
    w2_oik = _weight_norm(v2, g2)                    # (Cout, Cout, k)

    # Flatten taps for the im2col matmul: W[co, t*C + ci] = w_oik[co, ci, t]
    w1 = jnp.transpose(w1_oik, (0, 2, 1)).reshape(out_channels,
                                                  kernel_size * in_channels)
    w2 = jnp.transpose(w2_oik, (0, 2, 1)).reshape(out_channels,
                                                  kernel_size * out_channels)

    return (w1, b1.reshape(-1, 1), w2, b2.reshape(-1, 1),
            wr, br.reshape(-1, 1))


def reference_forward(x, params, kernel_size, dilation):
    """Pure-JAX reference replicating the PyTorch module exactly."""
    w1, b1, w2, b2, wr, br = params
    k, d = kernel_size, dilation
    p = (k - 1) * d
    Cout = w1.shape[0]
    Cin = w1.shape[1] // k

    def to_oih(w_flat, cin):
        return w_flat.reshape(Cout, k, cin).transpose(0, 2, 1)   # (Cout, C, k)

    def conv1d(x_ncl, w_oih, b, dil, pad):
        y = jax.lax.conv_general_dilated(
            x_ncl, w_oih, window_strides=(1,), padding=[(pad, pad)],
            rhs_dilation=(dil,), dimension_numbers=('NCH', 'OIH', 'NCH'))
        return y + b.reshape(1, -1, 1)

    def lrelu(v):
        return jnp.where(v > 0, v, 0.01 * v)

    h = conv1d(x, to_oih(w1, Cin), b1, d, p)
    h = lrelu(h[:, :, :h.shape[2] - p])              # chomp1 + relu1
    h2 = conv1d(h, to_oih(w2, Cout), b2, d, p)
    h2 = lrelu(h2[:, :, :h2.shape[2] - p])           # chomp2 + relu2
    res = conv1d(x, wr[:, :, None], br, 1, 0)        # 1x1 residual conv
    return lrelu(h2 + res)


if __name__ == "__main__":
    B, Cin, Cout, L = 2, 4, 8, 256                   # 2 L-tiles of 128
    kernel_size, stride, dilation = 3, 1, 2
    padding = (kernel_size - 1) * dilation           # causal padding = 4

    key = jax.random.PRNGKey(0)
    kx, kp = jax.random.split(key)
    x = jax.random.normal(kx, (B, Cin, L), jnp.float32)
    params = init_params(kp, Cin, Cout, kernel_size)

    out = causal_convolution_block(x, params, kernel_size, dilation)
    out = jax.block_until_ready(out)

    ref = reference_forward(x, params, kernel_size, dilation)
    assert out.shape == (B, Cout, L), out.shape
    assert jnp.allclose(out, ref, atol=1e-4, rtol=1e-4), \
        float(jnp.max(jnp.abs(out - ref)))

    print("KERNEL_OK")
</pallas_src>

<mosaic_0001>
module attributes {stable_mosaic.version = 11 : i64} {
  func.func @_causal_block_kernel(%arg0: i32, %arg1: i32, %arg2: memref<1x4x256xf32, #tpu.memory_space<vmem>>, %arg3: memref<1x4x256xf32, #tpu.memory_space<vmem>>, %arg4: memref<8x12xf32, #tpu.memory_space<vmem>>, %arg5: memref<8x1xf32, #tpu.memory_space<vmem>>, %arg6: memref<8x24xf32, #tpu.memory_space<vmem>>, %arg7: memref<8x1xf32, #tpu.memory_space<vmem>>, %arg8: memref<8x4xf32, #tpu.memory_space<vmem>>, %arg9: memref<8x1xf32, #tpu.memory_space<vmem>>, %arg10: memref<1x8x256xf32, #tpu.memory_space<vmem>>) attributes {dimension_semantics = [#tpu.dimension_semantics<parallel>, #tpu.dimension_semantics<parallel>], iteration_bounds = array<i64: 2, 1>, scalar_prefetch = 0 : i64, scratch_operands = 0 : i64, tpu.core_type = #tpu.core_type<tc>, window_params = [{transform_indices = @transform_0, window_bounds = array<i64: 1, 4, 256>}, {transform_indices = @transform_1, window_bounds = array<i64: 1, 4, 256>}, {pipeline_mode = #tpu.pipeline_mode<synchronous>, transform_indices = @transform_2, window_bounds = array<i64: 8, 12>}, {pipeline_mode = #tpu.pipeline_mode<synchronous>, transform_indices = @transform_3, window_bounds = array<i64: 8, 1>}, {pipeline_mode = #tpu.pipeline_mode<synchronous>, transform_indices = @transform_4, window_bounds = array<i64: 8, 24>}, {pipeline_mode = #tpu.pipeline_mode<synchronous>, transform_indices = @transform_5, window_bounds = array<i64: 8, 1>}, {pipeline_mode = #tpu.pipeline_mode<synchronous>, transform_indices = @transform_6, window_bounds = array<i64: 8, 4>}, {pipeline_mode = #tpu.pipeline_mode<synchronous>, transform_indices = @transform_7, window_bounds = array<i64: 8, 1>}, {transform_indices = @transform_8, window_bounds = array<i64: 1, 8, 256>}]} {
    %c0 = arith.constant 0 : index
    %c0_0 = arith.constant 0 : index
    %c0_1 = arith.constant 0 : index
    %0 = vector.load %arg2[%c0, %c0_0, %c0_1] : memref<1x4x256xf32, #tpu.memory_space<vmem>>, vector<1x4x256xf32>
    %1 = vector.shape_cast %0 : vector<1x4x256xf32> to vector<4x256xf32>
    %c0_2 = arith.constant 0 : index
    %c0_3 = arith.constant 0 : index
    %c248 = arith.constant 248 : index
    %2 = vector.load %arg3[%c0_2, %c0_3, %c248] : memref<1x4x256xf32, #tpu.memory_space<vmem>>, vector<1x4x8xf32>
    %3 = vector.shape_cast %2 : vector<1x4x8xf32> to vector<4x8xf32>
    %c0_i32 = arith.constant 0 : i32
    %4 = arith.cmpi sgt, %arg1, %c0_i32 : i32
    %cst = arith.constant 0.000000e+00 : f32
    %5 = vector.broadcast %cst : f32 to vector<4x8xf32>
    %6 = arith.select %4, %3, %5 : vector<4x8xf32>
    %7 = tpu.concatenate %6, %1 in 1 : vector<4x8xf32>, vector<4x256xf32> -> vector<4x264xf32>
    %8 = vector.extract_strided_slice %7 {offsets = [0, 0], sizes = [4, 260], strides = [1, 1]} : vector<4x264xf32> to vector<4x260xf32>
    %9 = vector.extract_strided_slice %7 {offsets = [0, 2], sizes = [4, 260], strides = [1, 1]} : vector<4x264xf32> to vector<4x260xf32>
    %10 = vector.extract_strided_slice %7 {offsets = [0, 4], sizes = [4, 260], strides = [1, 1]} : vector<4x264xf32> to vector<4x260xf32>
    %11 = tpu.concatenate %8, %9, %10 in 0 : vector<4x260xf32>, vector<4x260xf32>, vector<4x260xf32> -> vector<12x260xf32>
    %c0_4 = arith.constant 0 : index
    %c0_5 = arith.constant 0 : index
    %12 = vector.load %arg4[%c0_4, %c0_5] : memref<8x12xf32, #tpu.memory_space<vmem>>, vector<8x12xf32>
    %cst_6 = arith.constant dense<0.000000e+00> : vector<8x260xf32>
    %13 = tpu.matmul %12, %11, %cst_6 {dimension_numbers = #tpu.dot_dimension_numbers<[1], [0], [0], [1], [0, 0, 1, 1], [], []>} : vector<8x12xf32>, vector<12x260xf32>, vector<8x260xf32> -> vector<8x260xf32>
    %c0_7 = arith.constant 0 : index
    %c0_8 = arith.constant 0 : index
    %14 = vector.load %arg5[%c0_7, %c0_8] : memref<8x1xf32, #tpu.memory_space<vmem>>, vector<8x1xf32>
    %15 = vector.broadcast %14 : vector<8x1xf32> to vector<8x260xf32>
    %16 = arith.addf %13, %15 : vector<8x260xf32>
    %cst_9 = arith.constant 0.000000e+00 : f32
    %17 = vector.broadcast %cst_9 : f32 to vector<8x260xf32>
    %18 = arith.cmpf ogt, %16, %17 : vector<8x260xf32>
    %cst_10 = arith.constant 0.00999999977 : f32
    %19 = vector.broadcast %cst_10 : f32 to vector<8x260xf32>
    %20 = arith.mulf %19, %16 : vector<8x260xf32>
    %21 = arith.select %18, %16, %20 : vector<8x260xi1>, vector<8x260xf32>
    %22 = tpu.iota {dimensions = array<i32: 1>} : vector<1x260xi32>
    %c0_i32_11 = arith.constant 0 : i32
    %23 = arith.cmpi eq, %arg1, %c0_i32_11 : i32
    %c4_i32 = arith.constant 4 : i32
    %24 = vector.broadcast %c4_i32 : i32 to vector<1x260xi32>
    %25 = arith.cmpi slt, %22, %24 : vector<1x260xi32>
    %26 = vector.broadcast %23 : i1 to vector<1x260xi1>
    %27 = arith.andi %26, %25 : vector<1x260xi1>
    %cst_12 = arith.constant 0.000000e+00 : f32
    %28 = vector.shape_cast %27 : vector<1x260xi1> to vector<1x260xi1>
    %29 = vector.broadcast %28 : vector<1x260xi1> to vector<8x260xi1>
    %30 = vector.broadcast %cst_12 : f32 to vector<8x260xf32>
    %31 = arith.select %29, %30, %21 : vector<8x260xi1>, vector<8x260xf32>
    %32 = vector.extract_strided_slice %31 {offsets = [0, 0], sizes = [8, 256], strides = [1, 1]} : vector<8x260xf32> to vector<8x256xf32>
    %33 = vector.extract_strided_slice %31 {offsets = [0, 2], sizes = [8, 256], strides = [1, 1]} : vector<8x260xf32> to vector<8x256xf32>
    %34 = vector.extract_strided_slice %31 {offsets = [0, 4], sizes = [8, 256], strides = [1, 1]} : vector<8x260xf32> to vector<8x256xf32>
    %35 = tpu.concatenate %32, %33, %34 in 0 : vector<8x256xf32>, vector<8x256xf32>, vector<8x256xf32> -> vector<24x256xf32>
    %c0_13 = arith.constant 0 : index
    %c0_14 = arith.constant 0 : index
    %36 = vector.load %arg6[%c0_13, %c0_14] : memref<8x24xf32, #tpu.memory_space<vmem>>, vector<8x24xf32>
    %cst_15 = arith.constant dense<0.000000e+00> : vector<8x256xf32>
    %37 = tpu.matmul %36, %35, %cst_15 {dimension_numbers = #tpu.dot_dimension_numbers<[1], [0], [0], [1], [0, 0, 1, 1], [], []>} : vector<8x24xf32>, vector<24x256xf32>, vector<8x256xf32> -> vector<8x256xf32>
    %c0_16 = arith.constant 0 : index
    %c0_17 = arith.constant 0 : index
    %38 = vector.load %arg7[%c0_16, %c0_17] : memref<8x1xf32, #tpu.memory_space<vmem>>, vector<8x1xf32>
    %39 = vector.broadcast %38 : vector<8x1xf32> to vector<8x256xf32>
    %40 = arith.addf %37, %39 : vector<8x256xf32>
    %cst_18 = arith.constant 0.000000e+00 : f32
    %41 = vector.broadcast %cst_18 : f32 to vector<8x256xf32>
    %42 = arith.cmpf ogt, %40, %41 : vector<8x256xf32>
    %cst_19 = arith.constant 0.00999999977 : f32
    %43 = vector.broadcast %cst_19 : f32 to vector<8x256xf32>
    %44 = arith.mulf %43, %40 : vector<8x256xf32>
    %45 = arith.select %42, %40, %44 : vector<8x256xi1>, vector<8x256xf32>
    %c0_20 = arith.constant 0 : index
    %c0_21 = arith.constant 0 : index
    %46 = vector.load %arg8[%c0_20, %c0_21] : memref<8x4xf32, #tpu.memory_space<vmem>>, vector<8x4xf32>
    %cst_22 = arith.constant dense<0.000000e+00> : vector<8x256xf32>
    %47 = tpu.matmul %46, %1, %cst_22 {dimension_numbers = #tpu.dot_dimension_numbers<[1], [0], [0], [1], [0, 0, 1, 1], [], []>} : vector<8x4xf32>, vector<4x256xf32>, vector<8x256xf32> -> vector<8x256xf32>
    %c0_23 = arith.constant 0 : index
    %c0_24 = arith.constant 0 : index
    %48 = vector.load %arg9[%c0_23, %c0_24] : memref<8x1xf32, #tpu.memory_space<vmem>>, vector<8x1xf32>
    %49 = vector.broadcast %48 : vector<8x1xf32> to vector<8x256xf32>
    %50 = arith.addf %47, %49 : vector<8x256xf32>
    %51 = arith.addf %45, %50 : vector<8x256xf32>
    %cst_25 = arith.constant 0.000000e+00 : f32
    %52 = vector.broadcast %cst_25 : f32 to vector<8x256xf32>
    %53 = arith.cmpf ogt, %51, %52 : vector<8x256xf32>
    %cst_26 = arith.constant 0.00999999977 : f32
    %54 = vector.broadcast %cst_26 : f32 to vector<8x256xf32>
    %55 = arith.mulf %54, %51 : vector<8x256xf32>
    %56 = arith.select %53, %51, %55 : vector<8x256xi1>, vector<8x256xf32>
    %c0_27 = arith.constant 0 : index
    %c0_28 = arith.constant 0 : index
    %c0_29 = arith.constant 0 : index
    %57 = vector.load %arg10[%c0_27, %c0_28, %c0_29] : memref<1x8x256xf32, #tpu.memory_space<vmem>>, vector<1x8x256xf32>
    %58 = vector.shape_cast %57 : vector<1x8x256xf32> to vector<8x256xf32>
    %59 = vector.shape_cast %56 : vector<8x256xf32> to vector<1x8x256xf32>
    tpu.vector_store %arg10[%c0_27, %c0_28, %c0_29], %59 {strides = array<i32>} : memref<1x8x256xf32, #tpu.memory_space<vmem>>, vector<1x8x256xf32>,
    return
  }
  func.func @transform_0(%arg0: i32, %arg1: i32) -> (i32, i32, i32) {
    %c0_i32 = arith.constant 0 : i32
    %c0_i32_0 = arith.constant 0 : i32
    return %arg0, %c0_i32, %arg1 : i32, i32, i32
  }
  func.func @transform_1(%arg0: i32, %arg1: i32) -> (i32, i32, i32) {
    %c1_i32 = arith.constant 1 : i32
    %0 = arith.subi %arg1, %c1_i32 : i32
    %c0_i32 = arith.constant 0 : i32
    %1 = arith.maxsi %0, %c0_i32 : i32
    %c0_i32_0 = arith.constant 0 : i32
    %c0_i32_1 = arith.constant 0 : i32
    return %arg0, %c0_i32_0, %1 : i32, i32, i32
  }
  func.func @transform_2(%arg0: i32, %arg1: i32) -> (i32, i32) {
    %c0_i32 = arith.constant 0 : i32
    %c0_i32_0 = arith.constant 0 : i32
    %c0_i32_1 = arith.constant 0 : i32
    return %c0_i32, %c0_i32_0 : i32, i32
  }
  func.func @transform_3(%arg0: i32, %arg1: i32) -> (i32, i32) {
    %c0_i32 = arith.constant 0 : i32
    %c0_i32_0 = arith.constant 0 : i32
    %c0_i32_1 = arith.constant 0 : i32
    return %c0_i32, %c0_i32_0 : i32, i32
  }
  func.func @transform_4(%arg0: i32, %arg1: i32) -> (i32, i32) {
    %c0_i32 = arith.constant 0 : i32
    %c0_i32_0 = arith.constant 0 : i32
    %c0_i32_1 = arith.constant 0 : i32
    return %c0_i32, %c0_i32_0 : i32, i32
  }
  func.func @transform_5(%arg0: i32, %arg1: i32) -> (i32, i32) {
    %c0_i32 = arith.constant 0 : i32
    %c0_i32_0 = arith.constant 0 : i32
    %c0_i32_1 = arith.constant 0 : i32
    return %c0_i32, %c0_i32_0 : i32, i32
  }
  func.func @transform_6(%arg0: i32, %arg1: i32) -> (i32, i32) {
    %c0_i32 = arith.constant 0 : i32
    %c0_i32_0 = arith.constant 0 : i32
    %c0_i32_1 = arith.constant 0 : i32
    return %c0_i32, %c0_i32_0 : i32, i32
  }
  func.func @transform_7(%arg0: i32, %arg1: i32) -> (i32, i32) {
    %c0_i32 = arith.constant 0 : i32
    %c0_i32_0 = arith.constant 0 : i32
    %c0_i32_1 = arith.constant 0 : i32
    return %c0_i32, %c0_i32_0 : i32, i32
  }
  func.func @transform_8(%arg0: i32, %arg1: i32) -> (i32, i32, i32) {
    %c0_i32 = arith.constant 0 : i32
    %c0_i32_0 = arith.constant 0 : i32
    return %arg0, %c0_i32, %arg1 : i32, i32, i32
  }
}

</mosaic_0001>

<llo_original>
// kernel: tpu_custom_call.1
$region0: #{tpu_custom_call.1}
  #allocation0 [shape = 'u32[]', space=smem, size = 0x4, offset = 0x4, fixed_abs, tag = 'smem constant byte address 0x4 - core index']
  #allocation1 [shape = 'u32[72,128]{1,0:T(1,128)}', space=vmem, size = 0x9000, scoped, tag = 'internal scratch']
  %s0 = inlined_call_operand.vmem [shape: f32[2,4,256], index: 0, kind: input, shape index: {}]
  %s1 = inlined_call_operand.vmem [shape: f32[2,4,256], index: 1, kind: input, shape index: {}]
  %s2 = inlined_call_operand.vmem [shape: f32[8,12], index: 2, kind: input, shape index: {}]
  %s3 = inlined_call_operand.vmem [shape: f32[8,1], index: 3, kind: input, shape index: {}]
  %s4 = inlined_call_operand.hbm [shape: f32[8,24], index: 4, kind: input, shape index: {}]
  %s5 = inlined_call_operand.vmem [shape: f32[8,1], index: 5, kind: input, shape index: {}]
  %s6 = inlined_call_operand.vmem [shape: f32[8,4], index: 6, kind: input, shape index: {}]
  %s7 = inlined_call_operand.vmem [shape: f32[8,1], index: 7, kind: input, shape index: {}]
  %s8 = inlined_call_operand.hbm [shape: f32[2,8,256], index: 8, kind: output, shape index: {}]
  %s9 = sld [smem:[#allocation0]]
  $region69: #{tpu_custom_call.1} parent=0
    _
  %s11 = ssub.s32 1, %s9
  %s12 = scalar_select 0, %s11, %s9
  $region1: #{tpu_custom_call.1} parent=0
    #allocation2 [shape = 'u8[4096]{0}', space=vmem, size = 0x1000, scoped, tag = 'input window, operand 4, single buffered']
    #allocation3 [shape = 's32[2]{0}', space=sflag, size = 0x8, scoped, tag = 'scoped memory for tpu_custom_call.1']
    #allocation4 [shape = 's32[2]{0}', space=sflag, size = 0x8, scoped, tag = 'scoped memory for tpu_custom_call.1']
    #allocation5 [shape = 'u8[16384]{0}', space=vmem, size = 0x4000, scoped, tag = 'output window, operand 0']
    %13 = vsyncpa [#allocation3], 0
    %14 = vsyncpa [#allocation4], 0
    %s15 = scalar_lea.sflag [#allocation4], 1
    %16 = vsyncpa %s15, 0
    loop: start=0, step=1, limit=4
    $region2: #{tpu_custom_call.1} parent=1 // loop_pre_header
      _
    $region3: #{tpu_custom_call.1} parent=1 // loop_header
      %s18 = sphi 0, %s22
      %p19 = scmp.ge.s32.totalorder %s18, 4
      %s25 = sphi 0, %s37
      %s26 = sphi 0, %s33
      %s27 = sphi 0, %s25
      %s28 = sphi 0, %s26
      %s29 = sphi 0, %s27
      %s30 = sphi 0, %s28
      %s42 = sphi 0, %s44
      %s45 = sphi 0, %s42
      %s46 = sphi 0, %s45
      %s62 = sphi 0, %s46
      %s76 = sphi 0, %s78
      %s79 = sphi 0, %s76
      %s80 = sphi 0, %s79
      %s96 = sphi 0, %s80
      %s100 = sphi 0, %s100
      %s102 = sphi 0, %s100
      %s103 = sphi 0, %s102
      %s117 = sphi 0, %s103
      %s121 = sphi 0, %s121
      %s123 = sphi 0, %s121
      %s124 = sphi 0, %s123
      %s138 = sphi 0, %s124
      %s142 = sphi 0, %s142
      %s144 = sphi 0, %s142
      %s145 = sphi 0, %s144
      %s159 = sphi 0, %s145
      %s163 = sphi 0, %s163
      %s165 = sphi 0, %s163
      %s166 = sphi 0, %s165
      %s180 = sphi 0, %s166
      %s184 = sphi 0, %s184
      %s186 = sphi 0, %s184
      %s187 = sphi 0, %s186
      %s201 = sphi 0, %s187
      %s205 = sphi 0, %s205
      %s207 = sphi 0, %s205
      %s208 = sphi 0, %s207
      %s222 = sphi 0, %s208
      %s230 = sphi 0, %s232
      %s233 = sphi 0, %s230
      %s234 = sphi 0, %s233
      %s250 = sphi 0, %s234
    $region4: #{tpu_custom_call.1} parent=1 // loop_header_branch
      %21 = sbr.rel (%p19) target = $region8
    $region5: #{tpu_custom_call.1} parent=1 // loop_body
      %s23 = ssub.s32 %s18, 1
      %s24 = ssub.s32 %s18, 2
      %s31 = sadd.s32 1, %s26
      %p32 = scmp.ge.s32.totalorder %s31, 1
      %s33 = scalar_select %p32, 0, %s31
      %s34 = sadd.s32 1, %s25
      %s35 = scalar_select %p32, %s34, %s25
      %p36 = scmp.ge.s32.totalorder %s35, 2
      %s37 = scalar_select %p36, 0, %s35
      %s38 = ssub.s32 %s25, %s37
      %s39 = ssub.s32 %s26, %s33
      %s40 = sor.u32 %s38, %s39
      %p41 = scmp.eq.s32.totalorder %s40, 0
      %s43 = sadd.s32 %s42, 1
      %s44 = scalar_select %p41, %s42, %s43
      %p47 = pneg %p41
      %p48 = scmp.eq.s32.totalorder %s18, 1
      %p49 = por %p47, %p48
      %p50 = scmp.ne.s32.totalorder %s42, %s45
      %p51 = scmp.eq.s32.totalorder %s18, 0
      %p52 = por %p50, %p51
      %p53 = scmp.ne.s32.totalorder %s42, %s45
      %p54 = scmp.eq.s32.totalorder %s23, 1
      %p55 = por %p53, %p54
      %p56 = scmp.ne.s32.totalorder %s45, %s46
      %p57 = scmp.eq.s32.totalorder %s23, 0
      %p58 = por %p56, %p57
      %p59 = scmp.ne.s32.totalorder %s45, %s46
      %p60 = scmp.eq.s32.totalorder %s24, 1
      %p61 = por %p59, %p60
      %p63 = scmp.ne.s32.totalorder %s46, %s62
      %p64 = scmp.eq.s32.totalorder %s24, 0
      %p65 = por %p63, %p64
      %s66 = ssub.s32 %s26, 1
      %p67 = scmp.gt.s32.totalorder %s66, 0
      %s68 = scalar_select %p67, %s66, 0
      %s69 = ssub.s32 %s33, 1
      %p70 = scmp.gt.s32.totalorder %s69, 0
      %s71 = scalar_select %p70, %s69, 0
      %s72 = ssub.s32 %s25, %s37
      %s73 = ssub.s32 %s68, %s71
      %s74 = sor.u32 %s72, %s73
      %p75 = scmp.eq.s32.totalorder %s74, 0
      %s77 = sadd.s32 %s76, 1
      %s78 = scalar_select %p75, %s76, %s77
      %p81 = pneg %p75
      %p82 = scmp.eq.s32.totalorder %s18, 1
      %p83 = por %p81, %p82
      %p84 = scmp.ne.s32.totalorder %s76, %s79
      %p85 = scmp.eq.s32.totalorder %s18, 0
      %p86 = por %p84, %p85
      %p87 = scmp.ne.s32.totalorder %s76, %s79
      %p88 = scmp.eq.s32.totalorder %s23, 1
      %p89 = por %p87, %p88
      %p90 = scmp.ne.s32.totalorder %s79, %s80
      %p91 = scmp.eq.s32.totalorder %s23, 0
      %p92 = por %p90, %p91
      %p93 = scmp.ne.s32.totalorder %s79, %s80
      %p94 = scmp.eq.s32.totalorder %s24, 1
      %p95 = por %p93, %p94
      %p97 = scmp.ne.s32.totalorder %s80, %s96
      %p98 = scmp.eq.s32.totalorder %s24, 0
      %p99 = por %p97, %p98
      %s101 = sadd.s32 %s100, 1
      %p104 = scmp.eq.s32.totalorder %s18, 1
      %p105 = scmp.ne.s32.totalorder %s100, %s102
      %p106 = scmp.eq.s32.totalorder %s18, 0
      %p107 = por %p105, %p106
      %p108 = scmp.ne.s32.totalorder %s100, %s102
      %p109 = scmp.eq.s32.totalorder %s23, 1
      %p110 = por %p108, %p109
      %p111 = scmp.ne.s32.totalorder %s102, %s103
      %p112 = scmp.eq.s32.totalorder %s23, 0
      %p113 = por %p111, %p112
      %p114 = scmp.ne.s32.totalorder %s102, %s103
      %p115 = scmp.eq.s32.totalorder %s24, 1
      %p116 = por %p114, %p115
      %p118 = scmp.ne.s32.totalorder %s103, %s117
      %p119 = scmp.eq.s32.totalorder %s24, 0
      %p120 = por %p118, %p119
      %s122 = sadd.s32 %s121, 1
      %p125 = scmp.eq.s32.totalorder %s18, 1
      %p126 = scmp.ne.s32.totalorder %s121, %s123
      %p127 = scmp.eq.s32.totalorder %s18, 0
      %p128 = por %p126, %p127
      %p129 = scmp.ne.s32.totalorder %s121, %s123
      %p130 = scmp.eq.s32.totalorder %s23, 1
      %p131 = por %p129, %p130
      %p132 = scmp.ne.s32.totalorder %s123, %s124
      %p133 = scmp.eq.s32.totalorder %s23, 0
      %p134 = por %p132, %p133
      %p135 = scmp.ne.s32.totalorder %s123, %s124
      %p136 = scmp.eq.s32.totalorder %s24, 1
      %p137 = por %p135, %p136
      %p139 = scmp.ne.s32.totalorder %s124, %s138
      %p140 = scmp.eq.s32.totalorder %s24, 0
      %p141 = por %p139, %p140
      %s143 = sadd.s32 %s142, 1
      %p146 = scmp.eq.s32.totalorder %s18, 1
      %p147 = scmp.ne.s32.totalorder %s142, %s144
      %p148 = scmp.eq.s32.totalorder %s18, 0
      %p149 = por %p147, %p148
      %p150 = scmp.ne.s32.totalorder %s142, %s144
      %p151 = scmp.eq.s32.totalorder %s23, 1
      %p152 = por %p150, %p151
      %p153 = scmp.ne.s32.totalorder %s144, %s145
      %p154 = scmp.eq.s32.totalorder %s23, 0
      %p155 = por %p153, %p154
      %p156 = scmp.ne.s32.totalorder %s144, %s145
      %p157 = scmp.eq.s32.totalorder %s24, 1
      %p158 = por %p156, %p157
      %p160 = scmp.ne.s32.totalorder %s145, %s159
      %p161 = scmp.eq.s32.totalorder %s24, 0
      %p162 = por %p160, %p161
      %s164 = sadd.s32 %s163, 1
      %p167 = scmp.eq.s32.totalorder %s18, 1
      %p168 = scmp.ne.s32.totalorder %s163, %s165
      %p169 = scmp.eq.s32.totalorder %s18, 0
      %p170 = por %p168, %p169
      %p171 = scmp.ne.s32.totalorder %s163, %s165
      %p172 = scmp.eq.s32.totalorder %s23, 1
      %p173 = por %p171, %p172
      %p174 = scmp.ne.s32.totalorder %s165, %s166
      %p175 = scmp.eq.s32.totalorder %s23, 0
      %p176 = por %p174, %p175
      %p177 = scmp.ne.s32.totalorder %s165, %s166
      %p178 = scmp.eq.s32.totalorder %s24, 1
      %p179 = por %p177, %p178
      %p181 = scmp.ne.s32.totalorder %s166, %s180
      %p182 = scmp.eq.s32.totalorder %s24, 0
      %p183 = por %p181, %p182
      %s185 = sadd.s32 %s184, 1
      %p188 = scmp.eq.s32.totalorder %s18, 1
      %p189 = scmp.ne.s32.totalorder %s184, %s186
      %p190 = scmp.eq.s32.totalorder %s18, 0
      %p191 = por %p189, %p190
      %p192 = scmp.ne.s32.totalorder %s184, %s186
      %p193 = scmp.eq.s32.totalorder %s23, 1
      %p194 = por %p192, %p193
      %p195 = scmp.ne.s32.totalorder %s186, %s187
      %p196 = scmp.eq.s32.totalorder %s23, 0
      %p197 = por %p195, %p196
      %p198 = scmp.ne.s32.totalorder %s186, %s187
      %p199 = scmp.eq.s32.totalorder %s24, 1
      %p200 = por %p198, %p199
      %p202 = scmp.ne.s32.totalorder %s187, %s201
      %p203 = scmp.eq.s32.totalorder %s24, 0
      %p204 = por %p202, %p203
      %s206 = sadd.s32 %s205, 1
      %p209 = scmp.eq.s32.totalorder %s18, 1
      %p210 = scmp.ne.s32.totalorder %s205, %s207
      %p211 = scmp.eq.s32.totalorder %s18, 0
      %p212 = por %p210, %p211
      %p213 = scmp.ne.s32.totalorder %s205, %s207
      %p214 = scmp.eq.s32.totalorder %s23, 1
      %p215 = por %p213, %p214
      %p216 = scmp.ne.s32.totalorder %s207, %s208
      %p217 = scmp.eq.s32.totalorder %s23, 0
      %p218 = por %p216, %p217
      %p219 = scmp.ne.s32.totalorder %s207, %s208
      %p220 = scmp.eq.s32.totalorder %s24, 1
      %p221 = por %p219, %p220
      %p223 = scmp.ne.s32.totalorder %s208, %s222
      %p224 = scmp.eq.s32.totalorder %s24, 0
      %p225 = por %p223, %p224
      %s226 = ssub.s32 %s25, %s37
      %s227 = ssub.s32 %s26, %s33
      %s228 = sor.u32 %s226, %s227
      %p229 = scmp.eq.s32.totalorder %s228, 0
      %s231 = sadd.s32 %s230, 1
      %s232 = scalar_select %p229, %s230, %s231
      %p235 = pneg %p229
      %p236 = scmp.eq.s32.totalorder %s18, 1
      %p237 = por %p235, %p236
      %p238 = scmp.ne.s32.totalorder %s230, %s233
      %p239 = scmp.eq.s32.totalorder %s18, 0
      %p240 = por %p238, %p239
      %p241 = scmp.ne.s32.totalorder %s230, %s233
      %p242 = scmp.eq.s32.totalorder %s23, 1
      %p243 = por %p241, %p242
      %p244 = scmp.ne.s32.totalorder %s233, %s234
      %p245 = scmp.eq.s32.totalorder %s23, 0
      %p246 = por %p244, %p245
      %p247 = scmp.ne.s32.totalorder %s233, %s234
      %p248 = scmp.eq.s32.totalorder %s24, 1
      %p249 = por %p247, %p248
      %p251 = scmp.ne.s32.totalorder %s234, %s250
      %p252 = scmp.eq.s32.totalorder %s24, 0
      %p253 = por %p251, %p252
      %p254 = scmp.le.s32.totalorder 1, %s18
      %p255 = scmp.lt.s32.totalorder %s18, 3
      %p256 = pnand %p254, %p255
      %p257 = pneg %p256
      // Predicated region
      $region9: #{tpu_custom_call.1} parent=5 // pred_check
        _
      $region10: #{tpu_custom_call.1} parent=5 // pred_check_branch
        %259 = sbr.rel (%p256) target = $region12
      $region11: #{tpu_custom_call.1} parent=5 // pred_region
        %s260 = ssub.s32 %s18, 1
        // Predicated region
        $region13: #{tpu_custom_call.1} parent=11 // pred_check
          %p261 = pneg %p113
        $region14: #{tpu_custom_call.1} parent=11 // pred_check_branch
          %263 = sbr.rel (%p261) target = $region16
        $region15: #{tpu_custom_call.1} parent=11 // pred_region
          _
        $region16: #{tpu_custom_call.1} parent=11 // pred_fallthru
          _
        // Predicated region
        $region17: #{tpu_custom_call.1} parent=11 // pred_check
          %p264 = pneg %p134
        $region18: #{tpu_custom_call.1} parent=11 // pred_check_branch
          %266 = sbr.rel (%p264) target = $region20
        $region19: #{tpu_custom_call.1} parent=11 // pred_region
          _
        $region20: #{tpu_custom_call.1} parent=11 // pred_fallthru
          _
        // Predicated region
        $region21: #{tpu_custom_call.1} parent=11 // pred_check
          %p267 = pneg %p155
        $region22: #{tpu_custom_call.1} parent=11 // pred_check_branch
          %269 = sbr.rel (%p267) target = $region24
        $region23: #{tpu_custom_call.1} parent=11 // pred_region
          %271 = vsyncadd [#allocation3], 0
          %s273 = sshll.u32 %s4, 4
          %s274 = int_to_ptr.hbm [resolvable:$true] %s273
          %s275 = sshll.u32 [#allocation2], 4
          %s276 = int_to_ptr.vmem [resolvable:$true] %s275
          %278 = dma.hbm_to_vmem [thread:$0]  %s274, 128, %s276, [#allocation3]
        $region24: #{tpu_custom_call.1} parent=11 // pred_fallthru
          _
        // Predicated region
        $region25: #{tpu_custom_call.1} parent=11 // pred_check
          %p279 = pneg %p176
        $region26: #{tpu_custom_call.1} parent=11 // pred_check_branch
          %281 = sbr.rel (%p279) target = $region28
        $region27: #{tpu_custom_call.1} parent=11 // pred_region
          _
        $region28: #{tpu_custom_call.1} parent=11 // pred_fallthru
          _
        // Predicated region
        $region29: #{tpu_custom_call.1} parent=11 // pred_check
          %p282 = pneg %p197
        $region30: #{tpu_custom_call.1} parent=11 // pred_check_branch
          %284 = sbr.rel (%p282) target = $region32
        $region31: #{tpu_custom_call.1} parent=11 // pred_region
          _
        $region32: #{tpu_custom_call.1} parent=11 // pred_fallthru
          _
        // Predicated region
        $region33: #{tpu_custom_call.1} parent=11 // pred_check
          %p285 = pneg %p218
        $region34: #{tpu_custom_call.1} parent=11 // pred_check_branch
          %287 = sbr.rel (%p285) target = $region36
        $region35: #{tpu_custom_call.1} parent=11 // pred_region
          _
        $region36: #{tpu_custom_call.1} parent=11 // pred_fallthru
          _
      $region12: #{tpu_custom_call.1} parent=5 // pred_fallthru
        _
      %p288 = scmp.lt.s32.totalorder %s18, 2
      // Predicated region
      $region37: #{tpu_custom_call.1} parent=5 // pred_check
        %p289 = pneg %p288
      $region38: #{tpu_custom_call.1} parent=5 // pred_check_branch
        %291 = sbr.rel (%p289) target = $region40
      $region39: #{tpu_custom_call.1} parent=5 // pred_region
        // Predicated region
        $region41: #{tpu_custom_call.1} parent=39 // pred_check
          %p292 = pneg %p52
        $region42: #{tpu_custom_call.1} parent=39 // pred_check_branch
          %294 = sbr.rel (%p292) target = $region44
        $region43: #{tpu_custom_call.1} parent=39 // pred_region
          %s295 = smul.u32 2, %s26
          %p296 = scmp.lt.s32.totalorder %s25, 1
          %s297 = scalar_select %p296, %s25, 1
          %p298 = scmp.lt.s32.totalorder %s295, 1
          %s299 = scalar_select %p298, %s295, 1
          %s300 = smul.addr %s297, 2
          %s301 = sadd.s32 %s299, %s300
          %s302 = smul.addr %s301, 4
          %s303 = scalar_lea.vmem %s0, %s302
          %s304 = smul.u32 2, %s26
        $region44: #{tpu_custom_call.1} parent=39 // pred_fallthru
          _
        // Predicated region
        $region45: #{tpu_custom_call.1} parent=39 // pred_check
          %p305 = pneg %p86
        $region46: #{tpu_custom_call.1} parent=39 // pred_check_branch
          %307 = sbr.rel (%p305) target = $region48
        $region47: #{tpu_custom_call.1} parent=39 // pred_region
          %s308 = ssub.s32 %s26, 1
          %p309 = scmp.gt.s32.totalorder %s308, 0
          %s310 = scalar_select %p309, %s308, 0
          %s311 = smul.u32 2, %s310
          %p312 = scmp.lt.s32.totalorder %s25, 1
          %s313 = scalar_select %p312, %s25, 1
          %p314 = scmp.lt.s32.totalorder %s311, 1
          %s315 = scalar_select %p314, %s311, 1
          %s316 = smul.addr %s313, 2
          %s317 = sadd.s32 %s315, %s316
          %s318 = smul.addr %s317, 4
          %s319 = scalar_lea.vmem %s1, %s318
          %s320 = ssub.s32 %s26, 1
          %p321 = scmp.gt.s32.totalorder %s320, 0
          %s322 = scalar_select %p321, %s320, 0
          %s323 = smul.u32 2, %s322
        $region48: #{tpu_custom_call.1} parent=39 // pred_fallthru
          _
      $region40: #{tpu_custom_call.1} parent=5 // pred_fallthru
        _
      %p324 = scmp.le.s32.totalorder 1, %s18
      %p325 = scmp.lt.s32.totalorder %s18, 3
      %p326 = pnand %p324, %p325
      %p327 = pneg %p326
      // Predicated region
      $region49: #{tpu_custom_call.1} parent=5 // pred_check
        _
      $region50: #{tpu_custom_call.1} parent=5 // pred_check_branch
        %329 = sbr.rel (%p326) target = $region52
      $region51: #{tpu_custom_call.1} parent=5 // pred_region
        %s330 = ssub.s32 %s18, 1
        // Predicated region
        $region53: #{tpu_custom_call.1} parent=51 // pred_check
          %p331 = pneg %p155
        $region54: #{tpu_custom_call.1} parent=51 // pred_check_branch
          %333 = sbr.rel (%p331) target = $region56
        $region55: #{tpu_custom_call.1} parent=51 // pred_region
          %335 = dma.done [#allocation3], 128
        $region56: #{tpu_custom_call.1} parent=51 // pred_fallthru
          _
        %s336 = smul.u32 2, %s28
        %p337 = scmp.lt.s32.totalorder %s27, 1
        %s338 = scalar_select %p337, %s27, 1
        %p339 = scmp.lt.s32.totalorder %s336, 1
        %s340 = scalar_select %p339, %s336, 1
        %s341 = smul.addr %s338, 2
        %s342 = sadd.s32 %s340, %s341
        %s343 = smul.addr %s342, 4
        %s344 = scalar_lea.vmem %s0, %s343
        %p345 = pneg %p58
        %p346 = pneg %p55
        %s347 = ssub.s32 %s28, 1
        %p348 = scmp.gt.s32.totalorder %s347, 0
        %s349 = scalar_select %p348, %s347, 0
        %s350 = smul.u32 2, %s349
        %p351 = scmp.lt.s32.totalorder %s27, 1
        %s352 = scalar_select %p351, %s27, 1
        %p353 = scmp.lt.s32.totalorder %s350, 1
        %s354 = scalar_select %p353, %s350, 1
        %s355 = smul.addr %s352, 2
        %s356 = sadd.s32 %s354, %s355
        %s357 = smul.addr %s356, 4
        %s358 = scalar_lea.vmem %s1, %s357
        %p359 = pneg %p92
        %p360 = pneg %p89
        %p361 = pneg %p113
        %p362 = pneg %p110
        %p363 = pneg %p134
        %p364 = pneg %p131
        %p365 = pneg %p155
        %p366 = pneg %p152
        %p367 = pneg %p176
        %p368 = pneg %p173
        %p369 = pneg %p197
        %p370 = pneg %p194
        %p371 = pneg %p218
        %p372 = pneg %p215
        %p373 = pneg %p246
        %p374 = pneg %p243
        %s375 = sand.u32 %s233, 1
        %s376 = scalar_lea.sflag [#allocation4], %s375
        %s377 = sand.u32 %s233, 1
        %s378 = smul.addr %s377, 16
        %s379 = scalar_lea.vmem [#allocation5], %s378
        %s380 = smul.u32 2, %s28
        %p381 = scmp.lt.s32.totalorder %s27, 1
        %s382 = scalar_select %p381, %s27, 1
        %p383 = scmp.lt.s32.totalorder %s380, 1
        %s384 = scalar_select %p383, %s380, 1
        %s385 = smul.addr %s382, 2
        %s386 = sadd.s32 %s384, %s385
        %s387 = smul.addr %s386, 4
        %s388 = scalar_lea.vmem %s0, %s387
        %s389 = smul.u32 2, %s28
        %s390 = ssub.s32 %s28, 1
        %p391 = scmp.gt.s32.totalorder %s390, 0
        %s392 = scalar_select %p391, %s390, 0
        %s393 = smul.u32 2, %s392
        %p394 = scmp.lt.s32.totalorder %s27, 1
        %s395 = scalar_select %p394, %s27, 1
        %p396 = scmp.lt.s32.totalorder %s393, 1
        %s397 = scalar_select %p396, %s393, 1
        %s398 = smul.addr %s395, 2
        %s399 = sadd.s32 %s397, %s398
        %s400 = smul.addr %s399, 4
        %s401 = scalar_lea.vmem %s1, %s400
        %s402 = ssub.s32 %s28, 1
        %p403 = scmp.gt.s32.totalorder %s402, 0
        %s404 = scalar_select %p403, %s402, 0
        %s405 = smul.u32 2, %s404
        %s406 = smul.u32 2, %s28
        %v407 = vld [vmem:[%s388] sm:$0xff]
        %v408 = vld [vmem:[%s401 + $0x4] sm:$0xf]
        %p409 = scmp.gt.s32.totalorder %s28, 0
        %s410 = scalar_select %p409, 1, 0
        %v411 = vstv %s410
        %vm412 = vcmp.eq.s32.totalorder %v411, 1
        %v413 = vsel %vm412, %v408, 0.0
        %415 = vst [vmem:[#allocation1] ss:$2 sm:$0xff] %v413
        %v416 = vld.sshfl [vmem:[#allocation1] sm:$0xff pattern:$0x75316420]
        %417 = vrot.lane.b32.xlu0 %v416, 8
        %v418 = vpop.permute.xlu0 %417
        %421 = vst [vmem:[#allocation1] ss:$2 sm:$0xff] %v407
        %v422 = vld.sshfl [vmem:[#allocation1] sm:$0xff pattern:$0x75316420]
        %v423 = vld.sshfl [vmem:[#allocation1 + $0x8] sm:$0xff pattern:$0x75316420]
        %424 = vrot.lane.b32.xlu0 %v422, 8
        %v425 = vpop.permute.xlu0 %424
        %426 = vrot.lane.b32.xlu0 %v423, 8
        %v427 = vpop.permute.xlu0 %426
        %vm428 = vcmask 64512
        %v429 = vsel %vm428, %v425, %v427
        %v433 = vsel %vm428, %v418, %v425
        %v435 = vrot.slane %v433, 4
        %v436 = vrot.slane %v429, 4
        %v437 = vrot.slane %v427, 4
        %438 = vrot.lane.b32.xlu0 %v435, 126
        %v439 = vpop.permute.xlu0 %438
        %440 = vrot.lane.b32.xlu0 %v436, 126
        %v441 = vpop.permute.xlu0 %440
        %442 = vrot.lane.b32.xlu0 %v437, 126
        %v443 = vpop.permute.xlu0 %442
        %vm444 = vcmask 1031168
        %v445 = vsel %vm444, %v439, %v441
        %v446 = vsel %vm444, %v441, %v443
        %450 = vrot.lane.b32.xlu0 %v433, 124
        %v451 = vpop.permute.xlu0 %450
        %452 = vrot.lane.b32.xlu0 %v429, 124
        %v453 = vpop.permute.xlu0 %452
        %454 = vrot.lane.b32.xlu0 %v427, 124
        %v455 = vpop.permute.xlu0 %454
        %vm456 = vcmask 1014784
        %v457 = vsel %vm456, %v451, %v453
        %v458 = vsel %vm456, %v453, %v455
        %vm459 = vcmask 1043456
        %v460 = vsel %vm459, %v433, %v445
        %v461 = vsel %vm459, %v429, %v446
        %v462 = vsel %vm459, %v427, %v443
        %v463 = vld [vmem:[%s2] sm:$0xff]
        %v464 = vld [vmem:[%s3] sm:$0xff]
        %466 = vset.pattern.permute.xlu0 0
        %467 = vperm.xlu0 %466, %v464
        %v468 = vpop.permute.xlu0 %467
        %vm470 = vcmask 97280
        %v472 = vsel %vm470, %v463, 0
        %v474 = vsel %vm459, %v457, 0
        %v476 = vsel %vm459, %v458, 0
        %v478 = vsel %vm459, %v455, 0
        %480 = vmatpush.msra.mxu0 0.0
        %481 = vmatpush.msra.mxu0 0.0
        %482 = vmatpush.msra.mxu0 0.0
        %483 = vmatpush.msra.mxu0 0.0
        %484 = vmatpush.msra.mxu0 0.0
        %485 = vmatpush.msra.mxu0 0.0
        %486 = vmatpush.msra.mxu0 0.0
        %487 = vmatpush.msra.mxu0 0.0
        %488 = vmatpush.msra.mxu0 0.0
        %489 = vmatpush.msra.mxu0 0.0
        %490 = vmatpush.msra.mxu0 0.0
        %491 = vmatpush.msra.mxu0 0.0
        %492 = vmatpush.msra.mxu0 0.0
        %493 = vmatpush.msra.mxu0 0.0
        %494 = vmatpush.msra.mxu0 %v474
        %495 = vmatpush.msra.mxu0 %v460
        %496 = vmatmul.f32.gmra.mxu0 %v472
        %v497 = vpop.f32.mrf.mxu0
        %v498 = vadd.f32 %v468, %v497
        %499 = vdwg.mxu0
        %500 = vmatpush.msra.mxu0 0.0
        %501 = vmatpush.msra.mxu0 0.0
        %502 = vmatpush.msra.mxu0 0.0
        %503 = vmatpush.msra.mxu0 0.0
        %504 = vmatpush.msra.mxu0 0.0
        %505 = vmatpush.msra.mxu0 0.0
        %506 = vmatpush.msra.mxu0 0.0
        %507 = vmatpush.msra.mxu0 0.0
        %508 = vmatpush.msra.mxu0 0.0
        %509 = vmatpush.msra.mxu0 0.0
        %510 = vmatpush.msra.mxu0 0.0
        %511 = vmatpush.msra.mxu0 0.0
        %512 = vmatpush.msra.mxu0 0.0
        %513 = vmatpush.msra.mxu0 0.0
        %514 = vmatpush.msra.mxu0 %v476
        %515 = vmatpush.msra.mxu0 %v461
        %516 = vmatmul.f32.gmra.mxu0 %v472
        %v517 = vpop.f32.mrf.mxu0
        %v518 = vadd.f32 %v468, %v517
        %519 = vdwg.mxu0
        %520 = vmatpush.msra.mxu0 0.0
        %521 = vmatpush.msra.mxu0 0.0
        %522 = vmatpush.msra.mxu0 0.0
        %523 = vmatpush.msra.mxu0 0.0
        %524 = vmatpush.msra.mxu0 0.0
        %525 = vmatpush.msra.mxu0 0.0
        %526 = vmatpush.msra.mxu0 0.0
        %527 = vmatpush.msra.mxu0 0.0
        %528 = vmatpush.msra.mxu0 0.0
        %529 = vmatpush.msra.mxu0 0.0
        %530 = vmatpush.msra.mxu0 0.0
        %531 = vmatpush.msra.mxu0 0.0
        %532 = vmatpush.msra.mxu0 0.0
        %533 = vmatpush.msra.mxu0 0.0
        %534 = vmatpush.msra.mxu0 %v478
        %535 = vmatpush.msra.mxu0 %v462
        %536 = vmatmul.f32.gmra.mxu0 %v472
        %v537 = vpop.f32.mrf.mxu0
        %v538 = vadd.f32 %v468, %v537
        %539 = vdwg.mxu0
        %vm540 = vcmp.gt.f32.partialorder %v498, 0.0
        %vm541 = vcmp.gt.f32.partialorder %v518, 0.0
        %vm542 = vcmp.gt.f32.partialorder %v538, 0.0
        %v543 = vmul.f32 %v498, 0.01
        %v544 = vmul.f32 %v518, 0.01
        %v545 = vmul.f32 %v538, 0.01
        %v546 = vsel %vm540, %v498, %v543
        %v547 = vsel %vm541, %v518, %v544
        %v548 = vsel %vm542, %v538, %v545
        %v549 = vlaneseq
        %v550 = vand.u32 %v549, 127
        %v551 = vadd.s32 %v550, 128
        %v552 = vadd.s32 %v550, 256
        %p553 = scmp.eq.s32.totalorder %s28, 0
        %vm554 = vcmp.lt.s32.totalorder %v550, 4
        %vm555 = vcmp.lt.s32.totalorder %v551, 4
        %vm556 = vcmp.lt.s32.totalorder %v552, 4
        %s557 = scalar_select %p553, 1, 0
        %v558 = vstv %s557
        %vm559 = vcmp.eq.s32.totalorder %v558, 1
        %vm560 = vmand %vm559, %vm554
        %vm561 = vmand %vm559, %vm555
        %vm562 = vmand %vm559, %vm556
        %v563 = vsel %vm560, 1, 0
        %v564 = vsel %vm561, 1, 0
        %v565 = vsel %vm562, 1, 0
        %vm566 = vcmp.eq.s32.totalorder %v563, 1
        %vm567 = vcmp.eq.s32.totalorder %v564, 1
        %vm568 = vcmp.eq.s32.totalorder %v565, 1
        %v569 = vsel %vm566, 0.0, %v546
        %v570 = vsel %vm567, 0.0, %v547
        %v571 = vsel %vm568, 0.0, %v548
        %575 = vrot.lane.b32.xlu0 %v569, 126
        %v576 = vpop.permute.xlu0 %575
        %577 = vrot.lane.b32.xlu0 %v570, 126
        %v578 = vpop.permute.xlu0 %577
        %579 = vrot.lane.b32.xlu0 %v571, 126
        %v580 = vpop.permute.xlu0 %579
        %v581 = vsel %vm444, %v576, %v578
        %v582 = vsel %vm444, %v578, %v580
        %585 = vrot.lane.b32.xlu0 %v569, 124
        %v586 = vpop.permute.xlu0 %585
        %587 = vrot.lane.b32.xlu0 %v570, 124
        %v588 = vpop.permute.xlu0 %587
        %589 = vrot.lane.b32.xlu0 %v571, 124
        %v590 = vpop.permute.xlu0 %589
        %v591 = vsel %vm456, %v586, %v588
        %v592 = vsel %vm456, %v588, %v590
        %v595 = vld [vmem:[#allocation2] sm:$0xff]
        %v596 = vld [vmem:[%s5] sm:$0xff]
        %598 = vset.pattern.permute.xlu0 0
        %599 = vperm.xlu0 %598, %v596
        %v600 = vpop.permute.xlu0 %599
        %vm602 = vcmask 195584
        %v604 = vsel %vm602, %v595, 0
        %606 = vmatpush.msra.mxu0 0.0
        %607 = vmatpush.msra.mxu0 0.0
        %608 = vmatpush.msra.mxu0 0.0
        %609 = vmatpush.msra.mxu0 0.0
        %610 = vmatpush.msra.mxu0 0.0
        %611 = vmatpush.msra.mxu0 0.0
        %612 = vmatpush.msra.mxu0 0.0
        %613 = vmatpush.msra.mxu0 0.0
        %614 = vmatpush.msra.mxu0 0.0
        %615 = vmatpush.msra.mxu0 0.0
        %616 = vmatpush.msra.mxu0 0.0
        %617 = vmatpush.msra.mxu0 0.0
        %618 = vmatpush.msra.mxu0 0.0
        %619 = vmatpush.msra.mxu0 %v591
        %620 = vmatpush.msra.mxu0 %v581
        %621 = vmatpush.msra.mxu0 %v569
        %622 = vmatmul.f32.gmra.mxu0 %v604
        %v623 = vpop.f32.mrf.mxu0
        %v624 = vadd.f32 %v600, %v623
        %625 = vdwg.mxu0
        %626 = vmatpush.msra.mxu0 0.0
        %627 = vmatpush.msra.mxu0 0.0
        %628 = vmatpush.msra.mxu0 0.0
        %629 = vmatpush.msra.mxu0 0.0
        %630 = vmatpush.msra.mxu0 0.0
        %631 = vmatpush.msra.mxu0 0.0
        %632 = vmatpush.msra.mxu0 0.0
        %633 = vmatpush.msra.mxu0 0.0
        %634 = vmatpush.msra.mxu0 0.0
        %635 = vmatpush.msra.mxu0 0.0
        %636 = vmatpush.msra.mxu0 0.0
        %637 = vmatpush.msra.mxu0 0.0
        %638 = vmatpush.msra.mxu0 0.0
        %639 = vmatpush.msra.mxu0 %v592
        %640 = vmatpush.msra.mxu0 %v582
        %641 = vmatpush.msra.mxu0 %v570
        %642 = vmatmul.f32.gmra.mxu0 %v604
        %v643 = vpop.f32.mrf.mxu0
        %v644 = vadd.f32 %v600, %v643
        %645 = vdwg.mxu0
        %vm646 = vcmp.gt.f32.partialorder %v624, 0.0
        %vm647 = vcmp.gt.f32.partialorder %v644, 0.0
        %v648 = vmul.f32 %v624, 0.01
        %v649 = vmul.f32 %v644, 0.01
        %v650 = vsel %vm646, %v624, %v648
        %v651 = vsel %vm647, %v644, %v649
        %v652 = vld [vmem:[%s6] sm:$0xff]
        %v653 = vld [vmem:[%s7] sm:$0xff]
        %655 = vset.pattern.permute.xlu0 0
        %656 = vperm.xlu0 %655, %v653
        %v657 = vpop.permute.xlu0 %656
        %659 = vst [vmem:[#allocation1] ss:$2 sm:$0xff] %v407
        %v660 = vld.sshfl [vmem:[#allocation1] sm:$0xff pattern:$0x75316420]
        %v661 = vld.sshfl [vmem:[#allocation1 + $0x8] sm:$0xff pattern:$0x75316420]
        %vm662 = vcmask 31744
        %v664 = vsel %vm662, %v652, 0
        %v666 = vsel %vm459, %v660, 0
        %v668 = vsel %vm459, %v661, 0
        %670 = vmatpush.msra.mxu0 0.0
        %671 = vmatpush.msra.mxu0 0.0
        %672 = vmatpush.msra.mxu0 0.0
        %673 = vmatpush.msra.mxu0 0.0
        %674 = vmatpush.msra.mxu0 0.0
        %675 = vmatpush.msra.mxu0 0.0
        %676 = vmatpush.msra.mxu0 0.0
        %677 = vmatpush.msra.mxu0 0.0
        %678 = vmatpush.msra.mxu0 0.0
        %679 = vmatpush.msra.mxu0 0.0
        %680 = vmatpush.msra.mxu0 0.0
        %681 = vmatpush.msra.mxu0 0.0
        %682 = vmatpush.msra.mxu0 0.0
        %683 = vmatpush.msra.mxu0 0.0
        %684 = vmatpush.msra.mxu0 0.0
        %685 = vmatpush.msra.mxu0 %v666
        %686 = vmatmul.f32.gmra.mxu0 %v664
        %v687 = vpop.f32.mrf.mxu0
        %v688 = vadd.f32 %v657, %v687
        %689 = vdwg.mxu0
        %690 = vmatpush.msra.mxu0 0.0
        %691 = vmatpush.msra.mxu0 0.0
        %692 = vmatpush.msra.mxu0 0.0
        %693 = vmatpush.msra.mxu0 0.0
        %694 = vmatpush.msra.mxu0 0.0
        %695 = vmatpush.msra.mxu0 0.0
        %696 = vmatpush.msra.mxu0 0.0
        %697 = vmatpush.msra.mxu0 0.0
        %698 = vmatpush.msra.mxu0 0.0
        %699 = vmatpush.msra.mxu0 0.0
        %700 = vmatpush.msra.mxu0 0.0
        %701 = vmatpush.msra.mxu0 0.0
        %702 = vmatpush.msra.mxu0 0.0
        %703 = vmatpush.msra.mxu0 0.0
        %704 = vmatpush.msra.mxu0 0.0
        %705 = vmatpush.msra.mxu0 %v668
        %706 = vmatmul.f32.gmra.mxu0 %v664
        %v707 = vpop.f32.mrf.mxu0
        %v708 = vadd.f32 %v657, %v707
        %709 = vdwg.mxu0
        %v710 = vadd.f32 %v650, %v688
        %v711 = vadd.f32 %v651, %v708
        %vm712 = vcmp.gt.f32.partialorder %v710, 0.0
        %vm713 = vcmp.gt.f32.partialorder %v711, 0.0
        %v714 = vmul.f32 %v710, 0.01
        %v715 = vmul.f32 %v711, 0.01
        %v716 = vsel %vm712, %v710, %v714
        %v717 = vsel %vm713, %v711, %v715
        %718 = vst [vmem:[%s379] sm:$0xff] %v716
        %719 = vst [vmem:[%s379 + $0x8] sm:$0xff] %v717
        %s720 = sand.u32 %s233, 1
        %s721 = scalar_lea.sflag [#allocation4], %s720
        %s722 = sand.u32 %s233, 1
        %s723 = smul.addr %s722, 16
        %s724 = scalar_lea.vmem [#allocation5], %s723
        // Predicated region
        $region57: #{tpu_custom_call.1} parent=51 // pred_check
          %p725 = pneg %p243
        $region58: #{tpu_custom_call.1} parent=51 // pred_check_branch
          %727 = sbr.rel (%p725) target = $region60
        $region59: #{tpu_custom_call.1} parent=51 // pred_region
          %s728 = smul.u32 2, %s28
          %730 = vsyncadd %s721, 0
          %s731 = smul.addr %s27, 2
          %s732 = sadd.s32 %s728, %s731
          %s733 = smul.addr %s732, 8
          %s734 = scalar_lea.hbm %s8, %s733
          %s736 = sshll.u32 %s724, 4
          %s737 = int_to_ptr.vmem [resolvable:$true] %s736
          %s738 = sshll.u32 %s734, 4
          %s739 = int_to_ptr.hbm [resolvable:$true] %s738
          %741 = dma.vmem_to_hbm [thread:$0]  %s737, 256, %s739, %s721
        $region60: #{tpu_custom_call.1} parent=51 // pred_fallthru
          _
      $region52: #{tpu_custom_call.1} parent=5 // pred_fallthru
        _
      %p742 = scmp.le.s32.totalorder 2, %s18
      // Predicated region
      $region61: #{tpu_custom_call.1} parent=5 // pred_check
        %p743 = pneg %p742
      $region62: #{tpu_custom_call.1} parent=5 // pred_check_branch
        %745 = sbr.rel (%p743) target = $region64
      $region63: #{tpu_custom_call.1} parent=5 // pred_region
        %s746 = ssub.s32 %s18, 2
        // Predicated region
        $region65: #{tpu_custom_call.1} parent=63 // pred_check
          %p747 = pneg %p249
        $region66: #{tpu_custom_call.1} parent=63 // pred_check_branch
          %749 = sbr.rel (%p747) target = $region68
        $region67: #{tpu_custom_call.1} parent=63 // pred_region
          %s750 = sand.u32 %s234, 1
          %s751 = scalar_lea.sflag [#allocation4], %s750
          %s752 = sand.u32 %s234, 1
          %s753 = smul.addr %s752, 16
          %s754 = scalar_lea.vmem [#allocation5], %s753
          %756 = dma.done %s751, 256
        $region68: #{tpu_custom_call.1} parent=63 // pred_fallthru
          _
      $region64: #{tpu_custom_call.1} parent=5 // pred_fallthru
        _
    $region6: #{tpu_custom_call.1} parent=1 // loop_footer
      %s22 = sadd.s32 1, %s18
    $region7: #{tpu_custom_call.1} parent=1 // loop_footer_branch
      %17 = sbr.rel target = $region3
    $region8: #{tpu_custom_call.1} parent=1 // loop_exit
      _
    %757 = vsyncpa [#allocation3], 1
    %s758 = scalar_lea.sflag [#allocation3], 1
    %759 = vsyncpa %s758, 1
    %760 = vsyncpa [#allocation4], 1
    %s761 = scalar_lea.sflag [#allocation4], 1
    %762 = vsyncpa %s761, 1

</llo_original>
